<compile_context>
chip_gen: v7x
topology: tpu7x:2x2x1
jax: 0.10.0
libtpu: 0.0.40
codegen_flags: <defaults>
</compile_context>

<pallas_src>
import jax
import jax.numpy as jnp
from jax.experimental import pallas as pl
from jax.experimental.pallas import tpu as pltpu


def _round_up(n, m):
    return ((n + m - 1) // m) * m


def dqncp_kernel(x_ref, w1_ref, b1_ref, w2_ref, b2_ref, w3_ref, b3_ref, o_ref):
    x = x_ref[...]                                   # (4, TB) f32, batch on lanes
    w1 = w1_ref[...]                                 # (128, 4) f32

    # ---- Layer 1 (4 -> 128): VPU broadcast-FMAs, keep the MXU free. ----
    h1 = (w1[:, 0:1] * x[0:1, :]
          + w1[:, 1:2] * x[1:2, :]
          + w1[:, 2:3] * x[2:3, :]
          + w1[:, 3:4] * x[3:4, :]
          + b1_ref[...])                             # (128, TB) f32
    h1 = jnp.maximum(h1, 0.0)

    # ---- Layer 2 (128 -> 256): MXU, bf16 operands (optional), f32 acc. ----
    h2 = jnp.dot(w2_ref[...], h1.astype(w2_ref.dtype),
                 preferred_element_type=jnp.float32)
    h2 = jnp.maximum(h2 + b2_ref[...], 0.0)          # (256, TB) f32

    # ---- Layer 3 (256 -> 2, zero-padded to 8 output rows): MXU, bf16, f32 acc.
    out = jnp.dot(w3_ref[...], h2.astype(w3_ref.dtype),
                  preferred_element_type=jnp.float32)
    o_ref[...] = (out + b3_ref[...]).astype(o_ref.dtype)   # (8, TB), lane-dense


def dqncp_forward(x, params, *, block_b=4096, use_bf16=True):
    """Forward pass. x: (B, 4) f32 -> (B, 2) f32 (matches PyTorch DQNCP)."""
    w1, b1, w2, b2, w3, b3 = params                  # w*: (in, out), b*: (1, out)
    B = x.shape[0]
    n_out = w3.shape[1]                              # 2
    OUT_PAD = 8                                      # pad outputs only to 8 sublanes

    # Transposed (feature-major) parameter layouts; bf16 operands for the MXU dots.
    wdt = jnp.bfloat16 if use_bf16 else jnp.float32
    w1t = w1.T                                               # (128, 4)   f32
    b1t = b1.reshape(-1, 1)                                  # (128, 1)   f32
    w2t = w2.T.astype(wdt)                                   # (256, 128) bf16/f32
    b2t = b2.reshape(-1, 1)                                  # (256, 1)   f32
    w3t = jnp.zeros((OUT_PAD, w3.shape[0]), wdt).at[:n_out, :].set(w3.T.astype(wdt))
    b3t = jnp.zeros((OUT_PAD, 1), jnp.float32).at[:n_out, :].set(b3.reshape(-1, 1))

    # Batch lives on the lane axis: pad to a multiple of 128 and tile.
    B128 = _round_up(max(B, 1), 128)
    TB = min(_round_up(block_b, 128), B128)
    # v7x has 2 TensorCores: prefer >= 2 grid steps so "parallel" actually shards.
    if B128 // TB < 2 and B128 >= 256:
        TB = min(TB, _round_up(-(-B128 // 2), 128))
    B_pad = _round_up(B128, TB)
    grid = (B_pad // TB,)

    xt = jnp.pad(x, ((0, B_pad - B), (0, 0))).T      # (4, B_pad), zero-padded cols

    itemsize = 2 if use_bf16 else 4
    flops = 2 * B_pad * (4 * 128 + 128 * 256 + 256 * OUT_PAD)
    bytes_accessed = (xt.size * 4
                      + w1t.size * 4 + b1t.size * 4
                      + w2t.size * itemsize + b2t.size * 4
                      + w3t.size * itemsize + b3t.size * 4
                      + OUT_PAD * B_pad * 4)

    resident = lambda shape: pl.BlockSpec(shape, lambda i: (0, 0))

    out = pl.pallas_call(
        dqncp_kernel,
        out_shape=jax.ShapeDtypeStruct((OUT_PAD, B_pad), jnp.float32),
        grid=grid,
        in_specs=[
            pl.BlockSpec((4, TB), lambda i: (0, i)),       # x: streamed per tile
            resident((128, 4)),                            # w1^T
            resident((128, 1)),                            # b1
            resident((256, 128)),                          # w2^T (maybe bf16)
            resident((256, 1)),                            # b2
            resident((OUT_PAD, 256)),                      # w3^T (padded, maybe bf16)
            resident((OUT_PAD, 1)),                        # b3 (padded)
        ],
        out_specs=pl.BlockSpec((OUT_PAD, TB), lambda i: (0, i)),
        compiler_params=pltpu.CompilerParams(
            dimension_semantics=("parallel",)),            # v7x: shard across 2 TCs
        cost_estimate=pl.CostEstimate(
            flops=flops, transcendentals=0, bytes_accessed=bytes_accessed),
    )(xt, w1t, b1t, w2t, b2t, w3t, b3t)

    return out[:n_out, :B].T                          # (B, 2)


def init_params(key):
    # Mimics PyTorch nn.Linear default init: U(-1/sqrt(fan_in), +1/sqrt(fan_in)).
    # Weights stored as (in, out) so the math matches x @ W.T + b with PyTorch's
    # (out, in) layout; biases stored as (1, out).
    dims = [(4, 128), (128, 256), (256, 2)]
    params = []
    keys = jax.random.split(key, 2 * len(dims))
    for i, (fan_in, fan_out) in enumerate(dims):
        bound = 1.0 / (fan_in ** 0.5)
        w = jax.random.uniform(keys[2 * i], (fan_in, fan_out), jnp.float32,
                               minval=-bound, maxval=bound)
        b = jax.random.uniform(keys[2 * i + 1], (1, fan_out), jnp.float32,
                               minval=-bound, maxval=bound)
        params += [w, b]
    return tuple(params)


def reference_forward(x, params):
    # Pure-f32 reference matching the PyTorch module (HIGHEST precision dots so
    # the reference itself is not the source of error on TPU).
    w1, b1, w2, b2, w3, b3 = params
    hi = jax.lax.Precision.HIGHEST
    h1 = jnp.maximum(jnp.dot(x, w1, precision=hi) + b1, 0.0)
    h2 = jnp.maximum(jnp.dot(h1, w2, precision=hi) + b2, 0.0)
    return jnp.dot(h2, w3, precision=hi) + b3


if __name__ == "__main__":
    key = jax.random.PRNGKey(0)
    k_x, k_p, k_x2 = jax.random.split(key, 3)
    params = init_params(k_p)

    # Small CartPole-style batch (B=8, 4-dim state): single grid step.
    x_small = jax.random.normal(k_x, (8, 4), jnp.float32)
    ref_small = reference_forward(x_small, params)

    # f32 path: semantics should match the reference tightly.
    out_f32 = jax.block_until_ready(dqncp_forward(x_small, params, use_bf16=False))
    assert out_f32.shape == (8, 2)
    assert jnp.allclose(out_f32, ref_small, atol=1e-3, rtol=1e-3)

    # bf16-MXU perf path: small, bounded quantization error on layers 2-3.
    out_bf16 = jax.block_until_ready(dqncp_forward(x_small, params, use_bf16=True))
    assert jnp.allclose(out_bf16, ref_small, atol=2e-2, rtol=2e-2)

    # Larger, non-multiple batch with a small tile: exercises multi-step grid.
    x_big = jax.random.normal(k_x2, (1000, 4), jnp.float32)
    ref_big = reference_forward(x_big, params)
    out_big = jax.block_until_ready(
        dqncp_forward(x_big, params, block_b=256, use_bf16=True))
    assert out_big.shape == (1000, 2)
    assert jnp.allclose(out_big, ref_big, atol=2e-2, rtol=2e-2)

    # Default (large) tile: exercises the tile-splitting path that guarantees
    # >= 2 grid steps for v7x dual-TensorCore sharding.
    out_big2 = jax.block_until_ready(dqncp_forward(x_big, params, use_bf16=True))
    assert jnp.allclose(out_big2, ref_big, atol=2e-2, rtol=2e-2)

    print("KERNEL_OK")
</pallas_src>

<mosaic_0001>
module attributes {stable_mosaic.version = 11 : i64} {
  func.func @dqncp_kernel(%arg0: i32, %arg1: memref<4x128xf32, #tpu.memory_space<vmem>>, %arg2: memref<128x4xf32, #tpu.memory_space<vmem>>, %arg3: memref<128x1xf32, #tpu.memory_space<vmem>>, %arg4: memref<256x128xf32, #tpu.memory_space<vmem>>, %arg5: memref<256x1xf32, #tpu.memory_space<vmem>>, %arg6: memref<8x256xf32, #tpu.memory_space<vmem>>, %arg7: memref<8x1xf32, #tpu.memory_space<vmem>>, %arg8: memref<8x128xf32, #tpu.memory_space<vmem>>) attributes {dimension_semantics = [#tpu.dimension_semantics<parallel>], iteration_bounds = array<i64: 1>, scalar_prefetch = 0 : i64, scratch_operands = 0 : i64, tpu.core_type = #tpu.core_type<tc>, window_params = [{transform_indices = @transform_0, window_bounds = array<i64: 4, 128>}, {pipeline_mode = #tpu.pipeline_mode<synchronous>, transform_indices = @transform_1, window_bounds = array<i64: 128, 4>}, {pipeline_mode = #tpu.pipeline_mode<synchronous>, transform_indices = @transform_2, window_bounds = array<i64: 128, 1>}, {pipeline_mode = #tpu.pipeline_mode<synchronous>, transform_indices = @transform_3, window_bounds = array<i64: 256, 128>}, {pipeline_mode = #tpu.pipeline_mode<synchronous>, transform_indices = @transform_4, window_bounds = array<i64: 256, 1>}, {pipeline_mode = #tpu.pipeline_mode<synchronous>, transform_indices = @transform_5, window_bounds = array<i64: 8, 256>}, {pipeline_mode = #tpu.pipeline_mode<synchronous>, transform_indices = @transform_6, window_bounds = array<i64: 8, 1>}, {transform_indices = @transform_7, window_bounds = array<i64: 8, 128>}]} {
    %c0 = arith.constant 0 : index
    %c0_0 = arith.constant 0 : index
    %0 = vector.load %arg1[%c0, %c0_0] : memref<4x128xf32, #tpu.memory_space<vmem>>, vector<4x128xf32>
    %c0_1 = arith.constant 0 : index
    %c0_2 = arith.constant 0 : index
    %1 = vector.load %arg2[%c0_1, %c0_2] : memref<128x4xf32, #tpu.memory_space<vmem>>, vector<128x4xf32>
    %2 = vector.extract_strided_slice %1 {offsets = [0, 0], sizes = [128, 1], strides = [1, 1]} : vector<128x4xf32> to vector<128x1xf32>
    %3 = vector.extract_strided_slice %0 {offsets = [0, 0], sizes = [1, 128], strides = [1, 1]} : vector<4x128xf32> to vector<1x128xf32>
    %4 = vector.broadcast %2 : vector<128x1xf32> to vector<128x128xf32>
    %5 = vector.broadcast %3 : vector<1x128xf32> to vector<128x128xf32>
    %6 = arith.mulf %4, %5 : vector<128x128xf32>
    %7 = vector.extract_strided_slice %1 {offsets = [0, 1], sizes = [128, 1], strides = [1, 1]} : vector<128x4xf32> to vector<128x1xf32>
    %8 = vector.extract_strided_slice %0 {offsets = [1, 0], sizes = [1, 128], strides = [1, 1]} : vector<4x128xf32> to vector<1x128xf32>
    %9 = vector.broadcast %7 : vector<128x1xf32> to vector<128x128xf32>
    %10 = vector.broadcast %8 : vector<1x128xf32> to vector<128x128xf32>
    %11 = arith.mulf %9, %10 : vector<128x128xf32>
    %12 = arith.addf %6, %11 : vector<128x128xf32>
    %13 = vector.extract_strided_slice %1 {offsets = [0, 2], sizes = [128, 1], strides = [1, 1]} : vector<128x4xf32> to vector<128x1xf32>
    %14 = vector.extract_strided_slice %0 {offsets = [2, 0], sizes = [1, 128], strides = [1, 1]} : vector<4x128xf32> to vector<1x128xf32>
    %15 = vector.broadcast %13 : vector<128x1xf32> to vector<128x128xf32>
    %16 = vector.broadcast %14 : vector<1x128xf32> to vector<128x128xf32>
    %17 = arith.mulf %15, %16 : vector<128x128xf32>
    %18 = arith.addf %12, %17 : vector<128x128xf32>
    %19 = vector.extract_strided_slice %1 {offsets = [0, 3], sizes = [128, 1], strides = [1, 1]} : vector<128x4xf32> to vector<128x1xf32>
    %20 = vector.extract_strided_slice %0 {offsets = [3, 0], sizes = [1, 128], strides = [1, 1]} : vector<4x128xf32> to vector<1x128xf32>
    %21 = vector.broadcast %19 : vector<128x1xf32> to vector<128x128xf32>
    %22 = vector.broadcast %20 : vector<1x128xf32> to vector<128x128xf32>
    %23 = arith.mulf %21, %22 : vector<128x128xf32>
    %24 = arith.addf %18, %23 : vector<128x128xf32>
    %c0_3 = arith.constant 0 : index
    %c0_4 = arith.constant 0 : index
    %25 = vector.load %arg3[%c0_3, %c0_4] : memref<128x1xf32, #tpu.memory_space<vmem>>, vector<128x1xf32>
    %26 = vector.broadcast %25 : vector<128x1xf32> to vector<128x128xf32>
    %27 = arith.addf %24, %26 : vector<128x128xf32>
    %cst = arith.constant 0.000000e+00 : f32
    %28 = vector.broadcast %cst : f32 to vector<128x128xf32>
    %29 = arith.maximumf %27, %28 : vector<128x128xf32>
    %c0_5 = arith.constant 0 : index
    %c0_6 = arith.constant 0 : index
    %30 = vector.load %arg4[%c0_5, %c0_6] : memref<256x128xf32, #tpu.memory_space<vmem>>, vector<256x128xf32>
    %cst_7 = arith.constant dense<0.000000e+00> : vector<256x128xf32>
    %31 = tpu.matmul %30, %29, %cst_7 {dimension_numbers = #tpu.dot_dimension_numbers<[1], [0], [0], [1], [0, 0, 1, 1], [], []>} : vector<256x128xf32>, vector<128x128xf32>, vector<256x128xf32> -> vector<256x128xf32>
    %c0_8 = arith.constant 0 : index
    %c0_9 = arith.constant 0 : index
    %32 = vector.load %arg5[%c0_8, %c0_9] : memref<256x1xf32, #tpu.memory_space<vmem>>, vector<256x1xf32>
    %33 = vector.broadcast %32 : vector<256x1xf32> to vector<256x128xf32>
    %34 = arith.addf %31, %33 : vector<256x128xf32>
    %cst_10 = arith.constant 0.000000e+00 : f32
    %35 = vector.broadcast %cst_10 : f32 to vector<256x128xf32>
    %36 = arith.maximumf %34, %35 : vector<256x128xf32>
    %c0_11 = arith.constant 0 : index
    %c0_12 = arith.constant 0 : index
    %37 = vector.load %arg6[%c0_11, %c0_12] : memref<8x256xf32, #tpu.memory_space<vmem>>, vector<8x256xf32>
    %cst_13 = arith.constant dense<0.000000e+00> : vector<8x128xf32>
    %38 = tpu.matmul %37, %36, %cst_13 {dimension_numbers = #tpu.dot_dimension_numbers<[1], [0], [0], [1], [0, 0, 1, 1], [], []>} : vector<8x256xf32>, vector<256x128xf32>, vector<8x128xf32> -> vector<8x128xf32>
    %c0_14 = arith.constant 0 : index
    %c0_15 = arith.constant 0 : index
    %39 = vector.load %arg7[%c0_14, %c0_15] : memref<8x1xf32, #tpu.memory_space<vmem>>, vector<8x1xf32>
    %40 = vector.broadcast %39 : vector<8x1xf32> to vector<8x128xf32>
    %41 = arith.addf %38, %40 : vector<8x128xf32>
    %c0_16 = arith.constant 0 : index
    %c0_17 = arith.constant 0 : index
    %42 = vector.load %arg8[%c0_16, %c0_17] : memref<8x128xf32, #tpu.memory_space<vmem>>, vector<8x128xf32>
    tpu.vector_store %arg8[%c0_16, %c0_17], %41 {strides = array<i32>} : memref<8x128xf32, #tpu.memory_space<vmem>>, vector<8x128xf32>,
    return
  }
  func.func @transform_0(%arg0: i32) -> (i32, i32) {
    %c0_i32 = arith.constant 0 : i32
    %c0_i32_0 = arith.constant 0 : i32
    return %c0_i32, %arg0 : i32, i32
  }
  func.func @transform_1(%arg0: i32) -> (i32, i32) {
    %c0_i32 = arith.constant 0 : i32
    %c0_i32_0 = arith.constant 0 : i32
    %c0_i32_1 = arith.constant 0 : i32
    return %c0_i32, %c0_i32_0 : i32, i32
  }
  func.func @transform_2(%arg0: i32) -> (i32, i32) {
    %c0_i32 = arith.constant 0 : i32
    %c0_i32_0 = arith.constant 0 : i32
    %c0_i32_1 = arith.constant 0 : i32
    return %c0_i32, %c0_i32_0 : i32, i32
  }
  func.func @transform_3(%arg0: i32) -> (i32, i32) {
    %c0_i32 = arith.constant 0 : i32
    %c0_i32_0 = arith.constant 0 : i32
    %c0_i32_1 = arith.constant 0 : i32
    return %c0_i32, %c0_i32_0 : i32, i32
  }
  func.func @transform_4(%arg0: i32) -> (i32, i32) {
    %c0_i32 = arith.constant 0 : i32
    %c0_i32_0 = arith.constant 0 : i32
    %c0_i32_1 = arith.constant 0 : i32
    return %c0_i32, %c0_i32_0 : i32, i32
  }
  func.func @transform_5(%arg0: i32) -> (i32, i32) {
    %c0_i32 = arith.constant 0 : i32
    %c0_i32_0 = arith.constant 0 : i32
    %c0_i32_1 = arith.constant 0 : i32
    return %c0_i32, %c0_i32_0 : i32, i32
  }
  func.func @transform_6(%arg0: i32) -> (i32, i32) {
    %c0_i32 = arith.constant 0 : i32
    %c0_i32_0 = arith.constant 0 : i32
    %c0_i32_1 = arith.constant 0 : i32
    return %c0_i32, %c0_i32_0 : i32, i32
  }
  func.func @transform_7(%arg0: i32) -> (i32, i32) {
    %c0_i32 = arith.constant 0 : i32
    %c0_i32_0 = arith.constant 0 : i32
    return %c0_i32, %arg0 : i32, i32
  }
}

</mosaic_0001>

<llo_original>
// kernel: tpu_custom_call.1
$region0: #{tpu_custom_call.1}
  #allocation0 [shape = 'u32[]', space=smem, size = 0x4, offset = 0x4, fixed_abs, tag = 'smem constant byte address 0x4 - core index']
  #allocation1 [shape = 'u32[144,128]{1,0:T(1,128)}', space=vmem, size = 0x12000, scoped, tag = 'internal scratch']
  %s0 = inlined_call_operand.vmem [shape: f32[4,128], index: 0, kind: input, shape index: {}]
  %s1 = inlined_call_operand.vmem [shape: f32[128,4], index: 1, kind: input, shape index: {}]
  %s2 = inlined_call_operand.vmem [shape: f32[128,1], index: 2, kind: input, shape index: {}]
  %s3 = inlined_call_operand.vmem [shape: f32[256,128], index: 3, kind: input, shape index: {}]
  %s4 = inlined_call_operand.vmem [shape: f32[256,1], index: 4, kind: input, shape index: {}]
  %s5 = inlined_call_operand.vmem [shape: f32[8,256], index: 5, kind: input, shape index: {}]
  %s6 = inlined_call_operand.vmem [shape: f32[8,1], index: 6, kind: input, shape index: {}]
  %s7 = inlined_call_operand.hbm [shape: f32[8,128], index: 7, kind: output, shape index: {}]
  %s8 = sld [smem:[#allocation0]]
  $region38: #{tpu_custom_call.1} parent=0
    _
  %s10 = ssub.s32 1, %s8
  %s11 = scalar_select 0, %s10, %s8
  $region1: #{tpu_custom_call.1} parent=0
    #allocation2 [shape = 'u8[4096]{0}', space=vmem, size = 0x1000, scoped, tag = 'output window, operand 0, single buffered']
    #allocation3 [shape = 's32[1]{0}', space=sflag, size = 0x4, scoped, tag = 'scoped memory for tpu_custom_call.1']
    %12 = vsyncpa [#allocation3], 0
    // Predicated region
    $region2: #{tpu_custom_call.1} parent=1 // pred_check
      _
    $region3: #{tpu_custom_call.1} parent=1 // pred_check_branch
      %14 = sbr.rel (0) target = $region5
    $region4: #{tpu_custom_call.1} parent=1 // pred_region
      _
    $region5: #{tpu_custom_call.1} parent=1 // pred_fallthru
      _
    // Predicated region
    $region6: #{tpu_custom_call.1} parent=1 // pred_check
      _
    $region7: #{tpu_custom_call.1} parent=1 // pred_check_branch
      %16 = sbr.rel (0) target = $region9
    $region8: #{tpu_custom_call.1} parent=1 // pred_region
      _
    $region9: #{tpu_custom_call.1} parent=1 // pred_fallthru
      _
    // Predicated region
    $region10: #{tpu_custom_call.1} parent=1 // pred_check
      _
    $region11: #{tpu_custom_call.1} parent=1 // pred_check_branch
      %18 = sbr.rel (0) target = $region13
    $region12: #{tpu_custom_call.1} parent=1 // pred_region
      _
    $region13: #{tpu_custom_call.1} parent=1 // pred_fallthru
      _
    // Predicated region
    $region14: #{tpu_custom_call.1} parent=1 // pred_check
      _
    $region15: #{tpu_custom_call.1} parent=1 // pred_check_branch
      %20 = sbr.rel (0) target = $region17
    $region16: #{tpu_custom_call.1} parent=1 // pred_region
      _
    $region17: #{tpu_custom_call.1} parent=1 // pred_fallthru
      _
    // Predicated region
    $region18: #{tpu_custom_call.1} parent=1 // pred_check
      _
    $region19: #{tpu_custom_call.1} parent=1 // pred_check_branch
      %22 = sbr.rel (0) target = $region21
    $region20: #{tpu_custom_call.1} parent=1 // pred_region
      _
    $region21: #{tpu_custom_call.1} parent=1 // pred_fallthru
      _
    // Predicated region
    $region22: #{tpu_custom_call.1} parent=1 // pred_check
      _
    $region23: #{tpu_custom_call.1} parent=1 // pred_check_branch
      %24 = sbr.rel (0) target = $region25
    $region24: #{tpu_custom_call.1} parent=1 // pred_region
      _
    $region25: #{tpu_custom_call.1} parent=1 // pred_fallthru
      _
    // Predicated region
    $region26: #{tpu_custom_call.1} parent=1 // pred_check
      _
    $region27: #{tpu_custom_call.1} parent=1 // pred_check_branch
      %26 = sbr.rel (0) target = $region29
    $region28: #{tpu_custom_call.1} parent=1 // pred_region
      _
    $region29: #{tpu_custom_call.1} parent=1 // pred_fallthru
      _
    %v27 = vld [vmem:[%s0] sm:$0xf]
    %v28 = vld [vmem:[%s1] sm:$0xff]
    %v29 = vld [vmem:[%s1 + $0x8] sm:$0xff]
    %v30 = vld [vmem:[%s1 + $0x10] sm:$0xff]
    %v31 = vld [vmem:[%s1 + $0x18] sm:$0xff]
    %v32 = vld [vmem:[%s1 + $0x20] sm:$0xff]
    %v33 = vld [vmem:[%s1 + $0x28] sm:$0xff]
    %v34 = vld [vmem:[%s1 + $0x30] sm:$0xff]
    %v35 = vld [vmem:[%s1 + $0x38] sm:$0xff]
    %v36 = vld [vmem:[%s1 + $0x40] sm:$0xff]
    %v37 = vld [vmem:[%s1 + $0x48] sm:$0xff]
    %v38 = vld [vmem:[%s1 + $0x50] sm:$0xff]
    %v39 = vld [vmem:[%s1 + $0x58] sm:$0xff]
    %v40 = vld [vmem:[%s1 + $0x60] sm:$0xff]
    %v41 = vld [vmem:[%s1 + $0x68] sm:$0xff]
    %v42 = vld [vmem:[%s1 + $0x70] sm:$0xff]
    %v43 = vld [vmem:[%s1 + $0x78] sm:$0xff]
    %45 = vset.pattern.permute.xlu0 0
    %46 = vperm.xlu0 %45, %v28
    %v47 = vpop.permute.xlu0 %46
    %50 = vset.pattern.permute.xlu0 0
    %51 = vperm.xlu0 %50, %v29
    %v52 = vpop.permute.xlu0 %51
    %55 = vset.pattern.permute.xlu0 0
    %56 = vperm.xlu0 %55, %v30
    %v57 = vpop.permute.xlu0 %56
    %60 = vset.pattern.permute.xlu0 0
    %61 = vperm.xlu0 %60, %v31
    %v62 = vpop.permute.xlu0 %61
    %65 = vset.pattern.permute.xlu0 0
    %66 = vperm.xlu0 %65, %v32
    %v67 = vpop.permute.xlu0 %66
    %70 = vset.pattern.permute.xlu0 0
    %71 = vperm.xlu0 %70, %v33
    %v72 = vpop.permute.xlu0 %71
    %75 = vset.pattern.permute.xlu0 0
    %76 = vperm.xlu0 %75, %v34
    %v77 = vpop.permute.xlu0 %76
    %80 = vset.pattern.permute.xlu0 0
    %81 = vperm.xlu0 %80, %v35
    %v82 = vpop.permute.xlu0 %81
    %85 = vset.pattern.permute.xlu0 0
    %86 = vperm.xlu0 %85, %v36
    %v87 = vpop.permute.xlu0 %86
    %90 = vset.pattern.permute.xlu0 0
    %91 = vperm.xlu0 %90, %v37
    %v92 = vpop.permute.xlu0 %91
    %95 = vset.pattern.permute.xlu0 0
    %96 = vperm.xlu0 %95, %v38
    %v97 = vpop.permute.xlu0 %96
    %100 = vset.pattern.permute.xlu0 0
    %101 = vperm.xlu0 %100, %v39
    %v102 = vpop.permute.xlu0 %101
    %105 = vset.pattern.permute.xlu0 0
    %106 = vperm.xlu0 %105, %v40
    %v107 = vpop.permute.xlu0 %106
    %110 = vset.pattern.permute.xlu0 0
    %111 = vperm.xlu0 %110, %v41
    %v112 = vpop.permute.xlu0 %111
    %115 = vset.pattern.permute.xlu0 0
    %116 = vperm.xlu0 %115, %v42
    %v117 = vpop.permute.xlu0 %116
    %120 = vset.pattern.permute.xlu0 0
    %121 = vperm.xlu0 %120, %v43
    %v122 = vpop.permute.xlu0 %121
    %v124 = vlaneseq
    %v125 = vshrl.u32 %v124, 7
    %v126 = vsub.s32 0, %v125
    %v127 = vrot.slane %v27, %v126
    %v128 = vmul.f32 %v47, %v127
    %v129 = vmul.f32 %v52, %v127
    %v130 = vmul.f32 %v57, %v127
    %v131 = vmul.f32 %v62, %v127
    %v132 = vmul.f32 %v67, %v127
    %v133 = vmul.f32 %v72, %v127
    %v134 = vmul.f32 %v77, %v127
    %v135 = vmul.f32 %v82, %v127
    %v136 = vmul.f32 %v87, %v127
    %v137 = vmul.f32 %v92, %v127
    %v138 = vmul.f32 %v97, %v127
    %v139 = vmul.f32 %v102, %v127
    %v140 = vmul.f32 %v107, %v127
    %v141 = vmul.f32 %v112, %v127
    %v142 = vmul.f32 %v117, %v127
    %v143 = vmul.f32 %v122, %v127
    %144 = vset.pattern.permute.xlu0 1
    %145 = vperm.xlu0 %144, %v28
    %v146 = vpop.permute.xlu0 %145
    %148 = vset.pattern.permute.xlu0 1
    %149 = vperm.xlu0 %148, %v29
    %v150 = vpop.permute.xlu0 %149
    %152 = vset.pattern.permute.xlu0 1
    %153 = vperm.xlu0 %152, %v30
    %v154 = vpop.permute.xlu0 %153
    %156 = vset.pattern.permute.xlu0 1
    %157 = vperm.xlu0 %156, %v31
    %v158 = vpop.permute.xlu0 %157
    %160 = vset.pattern.permute.xlu0 1
    %161 = vperm.xlu0 %160, %v32
    %v162 = vpop.permute.xlu0 %161
    %164 = vset.pattern.permute.xlu0 1
    %165 = vperm.xlu0 %164, %v33
    %v166 = vpop.permute.xlu0 %165
    %168 = vset.pattern.permute.xlu0 1
    %169 = vperm.xlu0 %168, %v34
    %v170 = vpop.permute.xlu0 %169
    %172 = vset.pattern.permute.xlu0 1
    %173 = vperm.xlu0 %172, %v35
    %v174 = vpop.permute.xlu0 %173
    %176 = vset.pattern.permute.xlu0 1
    %177 = vperm.xlu0 %176, %v36
    %v178 = vpop.permute.xlu0 %177
    %180 = vset.pattern.permute.xlu0 1
    %181 = vperm.xlu0 %180, %v37
    %v182 = vpop.permute.xlu0 %181
    %184 = vset.pattern.permute.xlu0 1
    %185 = vperm.xlu0 %184, %v38
    %v186 = vpop.permute.xlu0 %185
    %188 = vset.pattern.permute.xlu0 1
    %189 = vperm.xlu0 %188, %v39
    %v190 = vpop.permute.xlu0 %189
    %192 = vset.pattern.permute.xlu0 1
    %193 = vperm.xlu0 %192, %v40
    %v194 = vpop.permute.xlu0 %193
    %196 = vset.pattern.permute.xlu0 1
    %197 = vperm.xlu0 %196, %v41
    %v198 = vpop.permute.xlu0 %197
    %200 = vset.pattern.permute.xlu0 1
    %201 = vperm.xlu0 %200, %v42
    %v202 = vpop.permute.xlu0 %201
    %204 = vset.pattern.permute.xlu0 1
    %205 = vperm.xlu0 %204, %v43
    %v206 = vpop.permute.xlu0 %205
    %v208 = vlaneseq
    %v209 = vshrl.u32 %v208, 7
    %v210 = vsub.s32 1, %v209
    %v211 = vrot.slane %v27, %v210
    %v212 = vmul.f32 %v146, %v211
    %v213 = vmul.f32 %v150, %v211
    %v214 = vmul.f32 %v154, %v211
    %v215 = vmul.f32 %v158, %v211
    %v216 = vmul.f32 %v162, %v211
    %v217 = vmul.f32 %v166, %v211
    %v218 = vmul.f32 %v170, %v211
    %v219 = vmul.f32 %v174, %v211
    %v220 = vmul.f32 %v178, %v211
    %v221 = vmul.f32 %v182, %v211
    %v222 = vmul.f32 %v186, %v211
    %v223 = vmul.f32 %v190, %v211
    %v224 = vmul.f32 %v194, %v211
    %v225 = vmul.f32 %v198, %v211
    %v226 = vmul.f32 %v202, %v211
    %v227 = vmul.f32 %v206, %v211
    %v228 = vadd.f32 %v128, %v212
    %v229 = vadd.f32 %v129, %v213
    %v230 = vadd.f32 %v130, %v214
    %v231 = vadd.f32 %v131, %v215
    %v232 = vadd.f32 %v132, %v216
    %v233 = vadd.f32 %v133, %v217
    %v234 = vadd.f32 %v134, %v218
    %v235 = vadd.f32 %v135, %v219
    %v236 = vadd.f32 %v136, %v220
    %v237 = vadd.f32 %v137, %v221
    %v238 = vadd.f32 %v138, %v222
    %v239 = vadd.f32 %v139, %v223
    %v240 = vadd.f32 %v140, %v224
    %v241 = vadd.f32 %v141, %v225
    %v242 = vadd.f32 %v142, %v226
    %v243 = vadd.f32 %v143, %v227
    %244 = vset.pattern.permute.xlu0 2
    %245 = vperm.xlu0 %244, %v28
    %v246 = vpop.permute.xlu0 %245
    %248 = vset.pattern.permute.xlu0 2
    %249 = vperm.xlu0 %248, %v29
    %v250 = vpop.permute.xlu0 %249
    %252 = vset.pattern.permute.xlu0 2
    %253 = vperm.xlu0 %252, %v30
    %v254 = vpop.permute.xlu0 %253
    %256 = vset.pattern.permute.xlu0 2
    %257 = vperm.xlu0 %256, %v31
    %v258 = vpop.permute.xlu0 %257
    %260 = vset.pattern.permute.xlu0 2
    %261 = vperm.xlu0 %260, %v32
    %v262 = vpop.permute.xlu0 %261
    %264 = vset.pattern.permute.xlu0 2
    %265 = vperm.xlu0 %264, %v33
    %v266 = vpop.permute.xlu0 %265
    %268 = vset.pattern.permute.xlu0 2
    %269 = vperm.xlu0 %268, %v34
    %v270 = vpop.permute.xlu0 %269
    %272 = vset.pattern.permute.xlu0 2
    %273 = vperm.xlu0 %272, %v35
    %v274 = vpop.permute.xlu0 %273
    %276 = vset.pattern.permute.xlu0 2
    %277 = vperm.xlu0 %276, %v36
    %v278 = vpop.permute.xlu0 %277
    %280 = vset.pattern.permute.xlu0 2
    %281 = vperm.xlu0 %280, %v37
    %v282 = vpop.permute.xlu0 %281
    %284 = vset.pattern.permute.xlu0 2
    %285 = vperm.xlu0 %284, %v38
    %v286 = vpop.permute.xlu0 %285
    %288 = vset.pattern.permute.xlu0 2
    %289 = vperm.xlu0 %288, %v39
    %v290 = vpop.permute.xlu0 %289
    %292 = vset.pattern.permute.xlu0 2
    %293 = vperm.xlu0 %292, %v40
    %v294 = vpop.permute.xlu0 %293
    %296 = vset.pattern.permute.xlu0 2
    %297 = vperm.xlu0 %296, %v41
    %v298 = vpop.permute.xlu0 %297
    %300 = vset.pattern.permute.xlu0 2
    %301 = vperm.xlu0 %300, %v42
    %v302 = vpop.permute.xlu0 %301
    %304 = vset.pattern.permute.xlu0 2
    %305 = vperm.xlu0 %304, %v43
    %v306 = vpop.permute.xlu0 %305
    %v308 = vlaneseq
    %v309 = vshrl.u32 %v308, 7
    %v310 = vsub.s32 2, %v309
    %v311 = vrot.slane %v27, %v310
    %v312 = vmul.f32 %v246, %v311
    %v313 = vmul.f32 %v250, %v311
    %v314 = vmul.f32 %v254, %v311
    %v315 = vmul.f32 %v258, %v311
    %v316 = vmul.f32 %v262, %v311
    %v317 = vmul.f32 %v266, %v311
    %v318 = vmul.f32 %v270, %v311
    %v319 = vmul.f32 %v274, %v311
    %v320 = vmul.f32 %v278, %v311
    %v321 = vmul.f32 %v282, %v311
    %v322 = vmul.f32 %v286, %v311
    %v323 = vmul.f32 %v290, %v311
    %v324 = vmul.f32 %v294, %v311
    %v325 = vmul.f32 %v298, %v311
    %v326 = vmul.f32 %v302, %v311
    %v327 = vmul.f32 %v306, %v311
    %v328 = vadd.f32 %v228, %v312
    %v329 = vadd.f32 %v229, %v313
    %v330 = vadd.f32 %v230, %v314
    %v331 = vadd.f32 %v231, %v315
    %v332 = vadd.f32 %v232, %v316
    %v333 = vadd.f32 %v233, %v317
    %v334 = vadd.f32 %v234, %v318
    %v335 = vadd.f32 %v235, %v319
    %v336 = vadd.f32 %v236, %v320
    %v337 = vadd.f32 %v237, %v321
    %v338 = vadd.f32 %v238, %v322
    %v339 = vadd.f32 %v239, %v323
    %v340 = vadd.f32 %v240, %v324
    %v341 = vadd.f32 %v241, %v325
    %v342 = vadd.f32 %v242, %v326
    %v343 = vadd.f32 %v243, %v327
    %344 = vset.pattern.permute.xlu0 3
    %345 = vperm.xlu0 %344, %v28
    %v346 = vpop.permute.xlu0 %345
    %348 = vset.pattern.permute.xlu0 3
    %349 = vperm.xlu0 %348, %v29
    %v350 = vpop.permute.xlu0 %349
    %352 = vset.pattern.permute.xlu0 3
    %353 = vperm.xlu0 %352, %v30
    %v354 = vpop.permute.xlu0 %353
    %356 = vset.pattern.permute.xlu0 3
    %357 = vperm.xlu0 %356, %v31
    %v358 = vpop.permute.xlu0 %357
    %360 = vset.pattern.permute.xlu0 3
    %361 = vperm.xlu0 %360, %v32
    %v362 = vpop.permute.xlu0 %361
    %364 = vset.pattern.permute.xlu0 3
    %365 = vperm.xlu0 %364, %v33
    %v366 = vpop.permute.xlu0 %365
    %368 = vset.pattern.permute.xlu0 3
    %369 = vperm.xlu0 %368, %v34
    %v370 = vpop.permute.xlu0 %369
    %372 = vset.pattern.permute.xlu0 3
    %373 = vperm.xlu0 %372, %v35
    %v374 = vpop.permute.xlu0 %373
    %376 = vset.pattern.permute.xlu0 3
    %377 = vperm.xlu0 %376, %v36
    %v378 = vpop.permute.xlu0 %377
    %380 = vset.pattern.permute.xlu0 3
    %381 = vperm.xlu0 %380, %v37
    %v382 = vpop.permute.xlu0 %381
    %384 = vset.pattern.permute.xlu0 3
    %385 = vperm.xlu0 %384, %v38
    %v386 = vpop.permute.xlu0 %385
    %388 = vset.pattern.permute.xlu0 3
    %389 = vperm.xlu0 %388, %v39
    %v390 = vpop.permute.xlu0 %389
    %392 = vset.pattern.permute.xlu0 3
    %393 = vperm.xlu0 %392, %v40
    %v394 = vpop.permute.xlu0 %393
    %396 = vset.pattern.permute.xlu0 3
    %397 = vperm.xlu0 %396, %v41
    %v398 = vpop.permute.xlu0 %397
    %400 = vset.pattern.permute.xlu0 3
    %401 = vperm.xlu0 %400, %v42
    %v402 = vpop.permute.xlu0 %401
    %404 = vset.pattern.permute.xlu0 3
    %405 = vperm.xlu0 %404, %v43
    %v406 = vpop.permute.xlu0 %405
    %v408 = vlaneseq
    %v409 = vshrl.u32 %v408, 7
    %v410 = vsub.s32 3, %v409
    %v411 = vrot.slane %v27, %v410
    %v412 = vmul.f32 %v346, %v411
    %v413 = vmul.f32 %v350, %v411
    %v414 = vmul.f32 %v354, %v411
    %v415 = vmul.f32 %v358, %v411
    %v416 = vmul.f32 %v362, %v411
    %v417 = vmul.f32 %v366, %v411
    %v418 = vmul.f32 %v370, %v411
    %v419 = vmul.f32 %v374, %v411
    %v420 = vmul.f32 %v378, %v411
    %v421 = vmul.f32 %v382, %v411
    %v422 = vmul.f32 %v386, %v411
    %v423 = vmul.f32 %v390, %v411
    %v424 = vmul.f32 %v394, %v411
    %v425 = vmul.f32 %v398, %v411
    %v426 = vmul.f32 %v402, %v411
    %v427 = vmul.f32 %v406, %v411
    %v428 = vadd.f32 %v328, %v412
    %v429 = vadd.f32 %v329, %v413
    %v430 = vadd.f32 %v330, %v414
    %v431 = vadd.f32 %v331, %v415
    %v432 = vadd.f32 %v332, %v416
    %v433 = vadd.f32 %v333, %v417
    %v434 = vadd.f32 %v334, %v418
    %v435 = vadd.f32 %v335, %v419
    %v436 = vadd.f32 %v336, %v420
    %v437 = vadd.f32 %v337, %v421
    %v438 = vadd.f32 %v338, %v422
    %v439 = vadd.f32 %v339, %v423
    %v440 = vadd.f32 %v340, %v424
    %v441 = vadd.f32 %v341, %v425
    %v442 = vadd.f32 %v342, %v426
    %v443 = vadd.f32 %v343, %v427
    %v444 = vld [vmem:[%s2] sm:$0xff]
    %v445 = vld [vmem:[%s2 + $0x8] sm:$0xff]
    %v446 = vld [vmem:[%s2 + $0x10] sm:$0xff]
    %v447 = vld [vmem:[%s2 + $0x18] sm:$0xff]
    %v448 = vld [vmem:[%s2 + $0x20] sm:$0xff]
    %v449 = vld [vmem:[%s2 + $0x28] sm:$0xff]
    %v450 = vld [vmem:[%s2 + $0x30] sm:$0xff]
    %v451 = vld [vmem:[%s2 + $0x38] sm:$0xff]
    %v452 = vld [vmem:[%s2 + $0x40] sm:$0xff]
    %v453 = vld [vmem:[%s2 + $0x48] sm:$0xff]
    %v454 = vld [vmem:[%s2 + $0x50] sm:$0xff]
    %v455 = vld [vmem:[%s2 + $0x58] sm:$0xff]
    %v456 = vld [vmem:[%s2 + $0x60] sm:$0xff]
    %v457 = vld [vmem:[%s2 + $0x68] sm:$0xff]
    %v458 = vld [vmem:[%s2 + $0x70] sm:$0xff]
    %v459 = vld [vmem:[%s2 + $0x78] sm:$0xff]
    %461 = vset.pattern.permute.xlu0 0
    %462 = vperm.xlu0 %461, %v444
    %v463 = vpop.permute.xlu0 %462
    %466 = vset.pattern.permute.xlu0 0
    %467 = vperm.xlu0 %466, %v445
    %v468 = vpop.permute.xlu0 %467
    %471 = vset.pattern.permute.xlu0 0
    %472 = vperm.xlu0 %471, %v446
    %v473 = vpop.permute.xlu0 %472
    %476 = vset.pattern.permute.xlu0 0
    %477 = vperm.xlu0 %476, %v447
    %v478 = vpop.permute.xlu0 %477
    %481 = vset.pattern.permute.xlu0 0
    %482 = vperm.xlu0 %481, %v448
    %v483 = vpop.permute.xlu0 %482
    %486 = vset.pattern.permute.xlu0 0
    %487 = vperm.xlu0 %486, %v449
    %v488 = vpop.permute.xlu0 %487
    %491 = vset.pattern.permute.xlu0 0
    %492 = vperm.xlu0 %491, %v450
    %v493 = vpop.permute.xlu0 %492
    %496 = vset.pattern.permute.xlu0 0
    %497 = vperm.xlu0 %496, %v451
    %v498 = vpop.permute.xlu0 %497
    %501 = vset.pattern.permute.xlu0 0
    %502 = vperm.xlu0 %501, %v452
    %v503 = vpop.permute.xlu0 %502
    %506 = vset.pattern.permute.xlu0 0
    %507 = vperm.xlu0 %506, %v453
    %v508 = vpop.permute.xlu0 %507
    %511 = vset.pattern.permute.xlu0 0
    %512 = vperm.xlu0 %511, %v454
    %v513 = vpop.permute.xlu0 %512
    %516 = vset.pattern.permute.xlu0 0
    %517 = vperm.xlu0 %516, %v455
    %v518 = vpop.permute.xlu0 %517
    %521 = vset.pattern.permute.xlu0 0
    %522 = vperm.xlu0 %521, %v456
    %v523 = vpop.permute.xlu0 %522
    %526 = vset.pattern.permute.xlu0 0
    %527 = vperm.xlu0 %526, %v457
    %v528 = vpop.permute.xlu0 %527
    %531 = vset.pattern.permute.xlu0 0
    %532 = vperm.xlu0 %531, %v458
    %v533 = vpop.permute.xlu0 %532
    %536 = vset.pattern.permute.xlu0 0
    %537 = vperm.xlu0 %536, %v459
    %v538 = vpop.permute.xlu0 %537
    %v540 = vadd.f32 %v428, %v463
    %v541 = vadd.f32 %v429, %v468
    %v542 = vadd.f32 %v430, %v473
    %v543 = vadd.f32 %v431, %v478
    %v544 = vadd.f32 %v432, %v483
    %v545 = vadd.f32 %v433, %v488
    %v546 = vadd.f32 %v434, %v493
    %v547 = vadd.f32 %v435, %v498
    %v548 = vadd.f32 %v436, %v503
    %v549 = vadd.f32 %v437, %v508
    %v550 = vadd.f32 %v438, %v513
    %v551 = vadd.f32 %v439, %v518
    %v552 = vadd.f32 %v440, %v523
    %v553 = vadd.f32 %v441, %v528
    %v554 = vadd.f32 %v442, %v533
    %v555 = vadd.f32 %v443, %v538
    %v556 = vmax.f32 %v540, 0.0
    %v557 = vmax.f32 %v541, 0.0
    %v558 = vmax.f32 %v542, 0.0
    %v559 = vmax.f32 %v543, 0.0
    %v560 = vmax.f32 %v544, 0.0
    %v561 = vmax.f32 %v545, 0.0
    %v562 = vmax.f32 %v546, 0.0
    %v563 = vmax.f32 %v547, 0.0
    %v564 = vmax.f32 %v548, 0.0
    %v565 = vmax.f32 %v549, 0.0
    %v566 = vmax.f32 %v550, 0.0
    %v567 = vmax.f32 %v551, 0.0
    %v568 = vmax.f32 %v552, 0.0
    %v569 = vmax.f32 %v553, 0.0
    %v570 = vmax.f32 %v554, 0.0
    %v571 = vmax.f32 %v555, 0.0
    %v572 = vld [vmem:[%s3] sm:$0xff]
    %v573 = vld [vmem:[%s3 + $0x8] sm:$0xff]
    %v574 = vld [vmem:[%s3 + $0x10] sm:$0xff]
    %v575 = vld [vmem:[%s3 + $0x18] sm:$0xff]
    %v576 = vld [vmem:[%s3 + $0x20] sm:$0xff]
    %v577 = vld [vmem:[%s3 + $0x28] sm:$0xff]
    %v578 = vld [vmem:[%s3 + $0x30] sm:$0xff]
    %v579 = vld [vmem:[%s3 + $0x38] sm:$0xff]
    %v580 = vld [vmem:[%s3 + $0x40] sm:$0xff]
    %v581 = vld [vmem:[%s3 + $0x48] sm:$0xff]
    %v582 = vld [vmem:[%s3 + $0x50] sm:$0xff]
    %v583 = vld [vmem:[%s3 + $0x58] sm:$0xff]
    %v584 = vld [vmem:[%s3 + $0x60] sm:$0xff]
    %v585 = vld [vmem:[%s3 + $0x68] sm:$0xff]
    %v586 = vld [vmem:[%s3 + $0x70] sm:$0xff]
    %v587 = vld [vmem:[%s3 + $0x78] sm:$0xff]
    %v588 = vld [vmem:[%s3 + $0x80] sm:$0xff]
    %v589 = vld [vmem:[%s3 + $0x88] sm:$0xff]
    %v590 = vld [vmem:[%s3 + $0x90] sm:$0xff]
    %v591 = vld [vmem:[%s3 + $0x98] sm:$0xff]
    %v592 = vld [vmem:[%s3 + $0xa0] sm:$0xff]
    %v593 = vld [vmem:[%s3 + $0xa8] sm:$0xff]
    %v594 = vld [vmem:[%s3 + $0xb0] sm:$0xff]
    %v595 = vld [vmem:[%s3 + $0xb8] sm:$0xff]
    %v596 = vld [vmem:[%s3 + $0xc0] sm:$0xff]
    %v597 = vld [vmem:[%s3 + $0xc8] sm:$0xff]
    %v598 = vld [vmem:[%s3 + $0xd0] sm:$0xff]
    %v599 = vld [vmem:[%s3 + $0xd8] sm:$0xff]
    %v600 = vld [vmem:[%s3 + $0xe0] sm:$0xff]
    %v601 = vld [vmem:[%s3 + $0xe8] sm:$0xff]
    %v602 = vld [vmem:[%s3 + $0xf0] sm:$0xff]
    %v603 = vld [vmem:[%s3 + $0xf8] sm:$0xff]
    %v604 = vld [vmem:[%s4] sm:$0xff]
    %v605 = vld [vmem:[%s4 + $0x8] sm:$0xff]
    %v606 = vld [vmem:[%s4 + $0x10] sm:$0xff]
    %v607 = vld [vmem:[%s4 + $0x18] sm:$0xff]
    %v608 = vld [vmem:[%s4 + $0x20] sm:$0xff]
    %v609 = vld [vmem:[%s4 + $0x28] sm:$0xff]
    %v610 = vld [vmem:[%s4 + $0x30] sm:$0xff]
    %v611 = vld [vmem:[%s4 + $0x38] sm:$0xff]
    %v612 = vld [vmem:[%s4 + $0x40] sm:$0xff]
    %v613 = vld [vmem:[%s4 + $0x48] sm:$0xff]
    %v614 = vld [vmem:[%s4 + $0x50] sm:$0xff]
    %v615 = vld [vmem:[%s4 + $0x58] sm:$0xff]
    %v616 = vld [vmem:[%s4 + $0x60] sm:$0xff]
    %v617 = vld [vmem:[%s4 + $0x68] sm:$0xff]
    %v618 = vld [vmem:[%s4 + $0x70] sm:$0xff]
    %v619 = vld [vmem:[%s4 + $0x78] sm:$0xff]
    %v620 = vld [vmem:[%s4 + $0x80] sm:$0xff]
    %v621 = vld [vmem:[%s4 + $0x88] sm:$0xff]
    %v622 = vld [vmem:[%s4 + $0x90] sm:$0xff]
    %v623 = vld [vmem:[%s4 + $0x98] sm:$0xff]
    %v624 = vld [vmem:[%s4 + $0xa0] sm:$0xff]
    %v625 = vld [vmem:[%s4 + $0xa8] sm:$0xff]
    %v626 = vld [vmem:[%s4 + $0xb0] sm:$0xff]
    %v627 = vld [vmem:[%s4 + $0xb8] sm:$0xff]
    %v628 = vld [vmem:[%s4 + $0xc0] sm:$0xff]
    %v629 = vld [vmem:[%s4 + $0xc8] sm:$0xff]
    %v630 = vld [vmem:[%s4 + $0xd0] sm:$0xff]
    %v631 = vld [vmem:[%s4 + $0xd8] sm:$0xff]
    %v632 = vld [vmem:[%s4 + $0xe0] sm:$0xff]
    %v633 = vld [vmem:[%s4 + $0xe8] sm:$0xff]
    %v634 = vld [vmem:[%s4 + $0xf0] sm:$0xff]
    %v635 = vld [vmem:[%s4 + $0xf8] sm:$0xff]
    %637 = vset.pattern.permute.xlu0 0
    %638 = vperm.xlu0 %637, %v604
    %v639 = vpop.permute.xlu0 %638
    %642 = vset.pattern.permute.xlu0 0
    %643 = vperm.xlu0 %642, %v605
    %v644 = vpop.permute.xlu0 %643
    %647 = vset.pattern.permute.xlu0 0
    %648 = vperm.xlu0 %647, %v606
    %v649 = vpop.permute.xlu0 %648
    %652 = vset.pattern.permute.xlu0 0
    %653 = vperm.xlu0 %652, %v607
    %v654 = vpop.permute.xlu0 %653
    %657 = vset.pattern.permute.xlu0 0
    %658 = vperm.xlu0 %657, %v608
    %v659 = vpop.permute.xlu0 %658
    %662 = vset.pattern.permute.xlu0 0
    %663 = vperm.xlu0 %662, %v609
    %v664 = vpop.permute.xlu0 %663
    %667 = vset.pattern.permute.xlu0 0
    %668 = vperm.xlu0 %667, %v610
    %v669 = vpop.permute.xlu0 %668
    %672 = vset.pattern.permute.xlu0 0
    %673 = vperm.xlu0 %672, %v611
    %v674 = vpop.permute.xlu0 %673
    %677 = vset.pattern.permute.xlu0 0
    %678 = vperm.xlu0 %677, %v612
    %v679 = vpop.permute.xlu0 %678
    %682 = vset.pattern.permute.xlu0 0
    %683 = vperm.xlu0 %682, %v613
    %v684 = vpop.permute.xlu0 %683
    %687 = vset.pattern.permute.xlu0 0
    %688 = vperm.xlu0 %687, %v614
    %v689 = vpop.permute.xlu0 %688
    %692 = vset.pattern.permute.xlu0 0
    %693 = vperm.xlu0 %692, %v615
    %v694 = vpop.permute.xlu0 %693
    %697 = vset.pattern.permute.xlu0 0
    %698 = vperm.xlu0 %697, %v616
    %v699 = vpop.permute.xlu0 %698
    %702 = vset.pattern.permute.xlu0 0
    %703 = vperm.xlu0 %702, %v617
    %v704 = vpop.permute.xlu0 %703
    %707 = vset.pattern.permute.xlu0 0
    %708 = vperm.xlu0 %707, %v618
    %v709 = vpop.permute.xlu0 %708
    %712 = vset.pattern.permute.xlu0 0
    %713 = vperm.xlu0 %712, %v619
    %v714 = vpop.permute.xlu0 %713
    %717 = vset.pattern.permute.xlu0 0
    %718 = vperm.xlu0 %717, %v620
    %v719 = vpop.permute.xlu0 %718
    %722 = vset.pattern.permute.xlu0 0
    %723 = vperm.xlu0 %722, %v621
    %v724 = vpop.permute.xlu0 %723
    %727 = vset.pattern.permute.xlu0 0
    %728 = vperm.xlu0 %727, %v622
    %v729 = vpop.permute.xlu0 %728
    %732 = vset.pattern.permute.xlu0 0
    %733 = vperm.xlu0 %732, %v623
    %v734 = vpop.permute.xlu0 %733
    %737 = vset.pattern.permute.xlu0 0
    %738 = vperm.xlu0 %737, %v624
    %v739 = vpop.permute.xlu0 %738
    %742 = vset.pattern.permute.xlu0 0
    %743 = vperm.xlu0 %742, %v625
    %v744 = vpop.permute.xlu0 %743
    %747 = vset.pattern.permute.xlu0 0
    %748 = vperm.xlu0 %747, %v626
    %v749 = vpop.permute.xlu0 %748
    %752 = vset.pattern.permute.xlu0 0
    %753 = vperm.xlu0 %752, %v627
    %v754 = vpop.permute.xlu0 %753
    %757 = vset.pattern.permute.xlu0 0
    %758 = vperm.xlu0 %757, %v628
    %v759 = vpop.permute.xlu0 %758
    %762 = vset.pattern.permute.xlu0 0
    %763 = vperm.xlu0 %762, %v629
    %v764 = vpop.permute.xlu0 %763
    %767 = vset.pattern.permute.xlu0 0
    %768 = vperm.xlu0 %767, %v630
    %v769 = vpop.permute.xlu0 %768
    %772 = vset.pattern.permute.xlu0 0
    %773 = vperm.xlu0 %772, %v631
    %v774 = vpop.permute.xlu0 %773
    %777 = vset.pattern.permute.xlu0 0
    %778 = vperm.xlu0 %777, %v632
    %v779 = vpop.permute.xlu0 %778
    %782 = vset.pattern.permute.xlu0 0
    %783 = vperm.xlu0 %782, %v633
    %v784 = vpop.permute.xlu0 %783
    %787 = vset.pattern.permute.xlu0 0
    %788 = vperm.xlu0 %787, %v634
    %v789 = vpop.permute.xlu0 %788
    %792 = vset.pattern.permute.xlu0 0
    %793 = vperm.xlu0 %792, %v635
    %v794 = vpop.permute.xlu0 %793
    %796 = vmatprep.subr.mxu0 0.0
    %797 = vmatpush1.msra.mxu0 %v556
    %798 = vmatprep.subr.mxu0 0.0
    %799 = vmatpush1.msra.mxu0 %v557
    %800 = vmatprep.subr.mxu0 0.0
    %801 = vmatpush1.msra.mxu0 %v558
    %802 = vmatprep.subr.mxu0 0.0
    %803 = vmatpush1.msra.mxu0 %v559
    %804 = vmatprep.subr.mxu0 0.0
    %805 = vmatpush1.msra.mxu0 %v560
    %806 = vmatprep.subr.mxu0 0.0
    %807 = vmatpush1.msra.mxu0 %v561
    %808 = vmatprep.subr.mxu0 0.0
    %809 = vmatpush1.msra.mxu0 %v562
    %810 = vmatprep.subr.mxu0 0.0
    %811 = vmatpush1.msra.mxu0 %v563
    %812 = vmatprep.subr.mxu0 0.0
    %813 = vmatpush1.msra.mxu0 %v564
    %814 = vmatprep.subr.mxu0 0.0
    %815 = vmatpush1.msra.mxu0 %v565
    %816 = vmatprep.subr.mxu0 0.0
    %817 = vmatpush1.msra.mxu0 %v566
    %818 = vmatprep.subr.mxu0 0.0
    %819 = vmatpush1.msra.mxu0 %v567
    %820 = vmatprep.subr.mxu0 0.0
    %821 = vmatpush1.msra.mxu0 %v568
    %822 = vmatprep.subr.mxu0 0.0
    %823 = vmatpush1.msra.mxu0 %v569
    %824 = vmatprep.subr.mxu0 0.0
    %825 = vmatpush1.msra.mxu0 %v570
    %826 = vmatprep.subr.mxu0 0.0
    %827 = vmatpush1.msra.mxu0 %v571
    %828 = vmatprep.subr.mxu0 0.0
    %829 = vmatpush1.msra.mxu0 0.0
    %830 = vmatprep.subr.mxu0 0.0
    %831 = vmatpush1.msra.mxu0 0.0
    %832 = vmatprep.subr.mxu0 0.0
    %833 = vmatpush1.msra.mxu0 0.0
    %834 = vmatprep.subr.mxu0 0.0
    %835 = vmatpush1.msra.mxu0 0.0
    %836 = vmatprep.subr.mxu0 0.0
    %837 = vmatpush1.msra.mxu0 0.0
    %838 = vmatprep.subr.mxu0 0.0
    %839 = vmatpush1.msra.mxu0 0.0
    %840 = vmatprep.subr.mxu0 0.0
    %841 = vmatpush1.msra.mxu0 0.0
    %842 = vmatprep.subr.mxu0 0.0
    %843 = vmatpush1.msra.mxu0 0.0
    %844 = vmatprep.subr.mxu0 0.0
    %845 = vmatpush1.msra.mxu0 0.0
    %846 = vmatprep.subr.mxu0 0.0
    %847 = vmatpush1.msra.mxu0 0.0
    %848 = vmatprep.subr.mxu0 0.0
    %849 = vmatpush1.msra.mxu0 0.0
    %850 = vmatprep.subr.mxu0 0.0
    %851 = vmatpush1.msra.mxu0 0.0
    %852 = vmatprep.subr.mxu0 0.0
    %853 = vmatpush1.msra.mxu0 0.0
    %854 = vmatprep.subr.mxu0 0.0
    %855 = vmatpush1.msra.mxu0 0.0
    %856 = vmatprep.subr.mxu0 0.0
    %857 = vmatpush1.msra.mxu0 0.0
    %858 = vmatprep.subr.mxu0 0.0
    %859 = vmatpush1.msra.mxu0 0.0
    %860 = vmatprep.mubr.f32.mxu0 0.0
    %861 = vmatmul.mubr.f32.gmra.mrb[0].mxu0 %v572
    %v862 = vpop.f32.mrb[0].mxu0
    %v863 = vadd.f32 %v639, %v862
    %v864 = vpop.f32.mrb[0].mxu0
    %865 = vmatprep.mubr.f32.mxu0 0.0
    %866 = vmatmul.mubr.f32.gmra.mrb[0].mxu0 %v573
    %v867 = vpop.f32.mrb[0].mxu0
    %v868 = vadd.f32 %v644, %v867
    %v869 = vpop.f32.mrb[0].mxu0
    %870 = vmatprep.mubr.f32.mxu0 0.0
    %871 = vmatmul.mubr.f32.gmra.mrb[0].mxu0 %v574
    %v872 = vpop.f32.mrb[0].mxu0
    %v873 = vadd.f32 %v649, %v872
    %v874 = vpop.f32.mrb[0].mxu0
    %875 = vmatprep.mubr.f32.mxu0 0.0
    %876 = vmatmul.mubr.f32.gmra.mrb[0].mxu0 %v575
    %v877 = vpop.f32.mrb[0].mxu0
    %v878 = vadd.f32 %v654, %v877
    %v879 = vpop.f32.mrb[0].mxu0
    %880 = vmatprep.mubr.f32.mxu0 0.0
    %881 = vmatmul.mubr.f32.gmra.mrb[0].mxu0 %v576
    %v882 = vpop.f32.mrb[0].mxu0
    %v883 = vadd.f32 %v659, %v882
    %v884 = vpop.f32.mrb[0].mxu0
    %885 = vmatprep.mubr.f32.mxu0 0.0
    %886 = vmatmul.mubr.f32.gmra.mrb[0].mxu0 %v577
    %v887 = vpop.f32.mrb[0].mxu0
    %v888 = vadd.f32 %v664, %v887
    %v889 = vpop.f32.mrb[0].mxu0
    %890 = vmatprep.mubr.f32.mxu0 0.0
    %891 = vmatmul.mubr.f32.gmra.mrb[0].mxu0 %v578
    %v892 = vpop.f32.mrb[0].mxu0
    %v893 = vadd.f32 %v669, %v892
    %v894 = vpop.f32.mrb[0].mxu0
    %895 = vmatprep.mubr.f32.mxu0 0.0
    %896 = vmatmul.mubr.f32.gmra.mrb[0].mxu0 %v579
    %v897 = vpop.f32.mrb[0].mxu0
    %v898 = vadd.f32 %v674, %v897
    %v899 = vpop.f32.mrb[0].mxu0
    %900 = vmatprep.mubr.f32.mxu0 0.0
    %901 = vmatmul.mubr.f32.gmra.mrb[0].mxu0 %v580
    %v902 = vpop.f32.mrb[0].mxu0
    %v903 = vadd.f32 %v679, %v902
    %v904 = vpop.f32.mrb[0].mxu0
    %905 = vmatprep.mubr.f32.mxu0 0.0
    %906 = vmatmul.mubr.f32.gmra.mrb[0].mxu0 %v581
    %v907 = vpop.f32.mrb[0].mxu0
    %v908 = vadd.f32 %v684, %v907
    %v909 = vpop.f32.mrb[0].mxu0
    %910 = vmatprep.mubr.f32.mxu0 0.0
    %911 = vmatmul.mubr.f32.gmra.mrb[0].mxu0 %v582
    %v912 = vpop.f32.mrb[0].mxu0
    %v913 = vadd.f32 %v689, %v912
    %v914 = vpop.f32.mrb[0].mxu0
    %915 = vmatprep.mubr.f32.mxu0 0.0
    %916 = vmatmul.mubr.f32.gmra.mrb[0].mxu0 %v583
    %v917 = vpop.f32.mrb[0].mxu0
    %v918 = vadd.f32 %v694, %v917
    %v919 = vpop.f32.mrb[0].mxu0
    %920 = vmatprep.mubr.f32.mxu0 0.0
    %921 = vmatmul.mubr.f32.gmra.mrb[0].mxu0 %v584
    %v922 = vpop.f32.mrb[0].mxu0
    %v923 = vadd.f32 %v699, %v922
    %v924 = vpop.f32.mrb[0].mxu0
    %925 = vmatprep.mubr.f32.mxu0 0.0
    %926 = vmatmul.mubr.f32.gmra.mrb[0].mxu0 %v585
    %v927 = vpop.f32.mrb[0].mxu0
    %v928 = vadd.f32 %v704, %v927
    %v929 = vpop.f32.mrb[0].mxu0
    %930 = vmatprep.mubr.f32.mxu0 0.0
    %931 = vmatmul.mubr.f32.gmra.mrb[0].mxu0 %v586
    %v932 = vpop.f32.mrb[0].mxu0
    %v933 = vadd.f32 %v709, %v932
    %v934 = vpop.f32.mrb[0].mxu0
    %935 = vmatprep.mubr.f32.mxu0 0.0
    %936 = vmatmul.mubr.f32.gmra.mrb[0].mxu0 %v587
    %v937 = vpop.f32.mrb[0].mxu0
    %v938 = vadd.f32 %v714, %v937
    %v939 = vpop.f32.mrb[0].mxu0
    %940 = vmatprep.mubr.f32.mxu0 0.0
    %941 = vmatmul.mubr.f32.gmra.mrb[0].mxu0 %v588
    %v942 = vpop.f32.mrb[0].mxu0
    %v943 = vadd.f32 %v719, %v942
    %v944 = vpop.f32.mrb[0].mxu0
    %945 = vmatprep.mubr.f32.mxu0 0.0
    %946 = vmatmul.mubr.f32.gmra.mrb[0].mxu0 %v589
    %v947 = vpop.f32.mrb[0].mxu0
    %v948 = vadd.f32 %v724, %v947
    %v949 = vpop.f32.mrb[0].mxu0
    %950 = vmatprep.mubr.f32.mxu0 0.0
    %951 = vmatmul.mubr.f32.gmra.mrb[0].mxu0 %v590
    %v952 = vpop.f32.mrb[0].mxu0
    %v953 = vadd.f32 %v729, %v952
    %v954 = vpop.f32.mrb[0].mxu0
    %955 = vmatprep.mubr.f32.mxu0 0.0
    %956 = vmatmul.mubr.f32.gmra.mrb[0].mxu0 %v591
    %v957 = vpop.f32.mrb[0].mxu0
    %v958 = vadd.f32 %v734, %v957
    %v959 = vpop.f32.mrb[0].mxu0
    %960 = vmatprep.mubr.f32.mxu0 0.0
    %961 = vmatmul.mubr.f32.gmra.mrb[0].mxu0 %v592
    %v962 = vpop.f32.mrb[0].mxu0
    %v963 = vadd.f32 %v739, %v962
    %v964 = vpop.f32.mrb[0].mxu0
    %965 = vmatprep.mubr.f32.mxu0 0.0
    %966 = vmatmul.mubr.f32.gmra.mrb[0].mxu0 %v593
    %v967 = vpop.f32.mrb[0].mxu0
    %v968 = vadd.f32 %v744, %v967
    %v969 = vpop.f32.mrb[0].mxu0
    %970 = vmatprep.mubr.f32.mxu0 0.0
    %971 = vmatmul.mubr.f32.gmra.mrb[0].mxu0 %v594
    %v972 = vpop.f32.mrb[0].mxu0
    %v973 = vadd.f32 %v749, %v972
    %v974 = vpop.f32.mrb[0].mxu0
    %975 = vmatprep.mubr.f32.mxu0 0.0
    %976 = vmatmul.mubr.f32.gmra.mrb[0].mxu0 %v595
    %v977 = vpop.f32.mrb[0].mxu0
    %v978 = vadd.f32 %v754, %v977
    %v979 = vpop.f32.mrb[0].mxu0
    %980 = vmatprep.mubr.f32.mxu0 0.0
    %981 = vmatmul.mubr.f32.gmra.mrb[0].mxu0 %v596
    %v982 = vpop.f32.mrb[0].mxu0
    %v983 = vadd.f32 %v759, %v982
    %v984 = vpop.f32.mrb[0].mxu0
    %985 = vmatprep.mubr.f32.mxu0 0.0
    %986 = vmatmul.mubr.f32.gmra.mrb[0].mxu0 %v597
    %v987 = vpop.f32.mrb[0].mxu0
    %v988 = vadd.f32 %v764, %v987
    %v989 = vpop.f32.mrb[0].mxu0
    %990 = vmatprep.mubr.f32.mxu0 0.0
    %991 = vmatmul.mubr.f32.gmra.mrb[0].mxu0 %v598
    %v992 = vpop.f32.mrb[0].mxu0
    %v993 = vadd.f32 %v769, %v992
    %v994 = vpop.f32.mrb[0].mxu0
    %995 = vmatprep.mubr.f32.mxu0 0.0
    %996 = vmatmul.mubr.f32.gmra.mrb[0].mxu0 %v599
    %v997 = vpop.f32.mrb[0].mxu0
    %v998 = vadd.f32 %v774, %v997
    %v999 = vpop.f32.mrb[0].mxu0
    %1000 = vmatprep.mubr.f32.mxu0 0.0
    %1001 = vmatmul.mubr.f32.gmra.mrb[0].mxu0 %v600
    %v1002 = vpop.f32.mrb[0].mxu0
    %v1003 = vadd.f32 %v779, %v1002
    %v1004 = vpop.f32.mrb[0].mxu0
    %1005 = vmatprep.mubr.f32.mxu0 0.0
    %1006 = vmatmul.mubr.f32.gmra.mrb[0].mxu0 %v601
    %v1007 = vpop.f32.mrb[0].mxu0
    %v1008 = vadd.f32 %v784, %v1007
    %v1009 = vpop.f32.mrb[0].mxu0
    %1010 = vmatprep.mubr.f32.mxu0 0.0
    %1011 = vmatmul.mubr.f32.gmra.mrb[0].mxu0 %v602
    %v1012 = vpop.f32.mrb[0].mxu0
    %v1013 = vadd.f32 %v789, %v1012
    %v1014 = vpop.f32.mrb[0].mxu0
    %1015 = vmatprep.mubr.f32.mxu0 0.0
    %1016 = vmatmul.mubr.f32.gmra.mrb[0].mxu0 %v603
    %v1017 = vpop.f32.mrb[0].mxu0
    %v1018 = vadd.f32 %v794, %v1017
    %v1019 = vpop.f32.mrb[0].mxu0
    %1020 = vdwg.mxu0
    %v1021 = vmax.f32 %v863, 0.0
    %v1022 = vmax.f32 %v868, 0.0
    %v1023 = vmax.f32 %v873, 0.0
    %v1024 = vmax.f32 %v878, 0.0
    %v1025 = vmax.f32 %v883, 0.0
    %v1026 = vmax.f32 %v888, 0.0
    %v1027 = vmax.f32 %v893, 0.0
    %v1028 = vmax.f32 %v898, 0.0
    %v1029 = vmax.f32 %v903, 0.0
    %v1030 = vmax.f32 %v908, 0.0
    %v1031 = vmax.f32 %v913, 0.0
    %v1032 = vmax.f32 %v918, 0.0
    %v1033 = vmax.f32 %v923, 0.0
    %v1034 = vmax.f32 %v928, 0.0
    %v1035 = vmax.f32 %v933, 0.0
    %v1036 = vmax.f32 %v938, 0.0
    %v1037 = vmax.f32 %v943, 0.0
    %v1038 = vmax.f32 %v948, 0.0
    %v1039 = vmax.f32 %v953, 0.0
    %v1040 = vmax.f32 %v958, 0.0
    %v1041 = vmax.f32 %v963, 0.0
    %v1042 = vmax.f32 %v968, 0.0
    %v1043 = vmax.f32 %v973, 0.0
    %v1044 = vmax.f32 %v978, 0.0
    %v1045 = vmax.f32 %v983, 0.0
    %v1046 = vmax.f32 %v988, 0.0
    %v1047 = vmax.f32 %v993, 0.0
    %v1048 = vmax.f32 %v998, 0.0
    %v1049 = vmax.f32 %v1003, 0.0
    %v1050 = vmax.f32 %v1008, 0.0
    %v1051 = vmax.f32 %v1013, 0.0
    %v1052 = vmax.f32 %v1018, 0.0
    %v1053 = vld [vmem:[%s5] sm:$0xff]
    %v1054 = vld [vmem:[%s5 + $0x8] sm:$0xff]
    %v1055 = vld [vmem:[%s6] sm:$0xff]
    %1057 = vset.pattern.permute.xlu0 0
    %1058 = vperm.xlu0 %1057, %v1055
    %v1059 = vpop.permute.xlu0 %1058
    %1061 = vmatprep.subr.mxu0 0.0
    %1062 = vmatpush1.msra.mxu0 %v1021
    %1063 = vmatprep.subr.mxu0 0.0
    %1064 = vmatpush1.msra.mxu0 %v1022
    %1065 = vmatprep.subr.mxu0 0.0
    %1066 = vmatpush1.msra.mxu0 %v1023
    %1067 = vmatprep.subr.mxu0 0.0
    %1068 = vmatpush1.msra.mxu0 %v1024
    %1069 = vmatprep.subr.mxu0 0.0
    %1070 = vmatpush1.msra.mxu0 %v1025
    %1071 = vmatprep.subr.mxu0 0.0
    %1072 = vmatpush1.msra.mxu0 %v1026
    %1073 = vmatprep.subr.mxu0 0.0
    %1074 = vmatpush1.msra.mxu0 %v1027
    %1075 = vmatprep.subr.mxu0 0.0
    %1076 = vmatpush1.msra.mxu0 %v1028
    %1077 = vmatprep.subr.mxu0 0.0
    %1078 = vmatpush1.msra.mxu0 %v1029
    %1079 = vmatprep.subr.mxu0 0.0
    %1080 = vmatpush1.msra.mxu0 %v1030
    %1081 = vmatprep.subr.mxu0 0.0
    %1082 = vmatpush1.msra.mxu0 %v1031
    %1083 = vmatprep.subr.mxu0 0.0
    %1084 = vmatpush1.msra.mxu0 %v1032
    %1085 = vmatprep.subr.mxu0 0.0
    %1086 = vmatpush1.msra.mxu0 %v1033
    %1087 = vmatprep.subr.mxu0 0.0
    %1088 = vmatpush1.msra.mxu0 %v1034
    %1089 = vmatprep.subr.mxu0 0.0
    %1090 = vmatpush1.msra.mxu0 %v1035
    %1091 = vmatprep.subr.mxu0 0.0
    %1092 = vmatpush1.msra.mxu0 %v1036
    %1093 = vmatprep.subr.mxu0 0.0
    %1094 = vmatpush1.msra.mxu0 %v1037
    %1095 = vmatprep.subr.mxu0 0.0
    %1096 = vmatpush1.msra.mxu0 %v1038
    %1097 = vmatprep.subr.mxu0 0.0
    %1098 = vmatpush1.msra.mxu0 %v1039
    %1099 = vmatprep.subr.mxu0 0.0
    %1100 = vmatpush1.msra.mxu0 %v1040
    %1101 = vmatprep.subr.mxu0 0.0
    %1102 = vmatpush1.msra.mxu0 %v1041
    %1103 = vmatprep.subr.mxu0 0.0
    %1104 = vmatpush1.msra.mxu0 %v1042
    %1105 = vmatprep.subr.mxu0 0.0
    %1106 = vmatpush1.msra.mxu0 %v1043
    %1107 = vmatprep.subr.mxu0 0.0
    %1108 = vmatpush1.msra.mxu0 %v1044
    %1109 = vmatprep.subr.mxu0 0.0
    %1110 = vmatpush1.msra.mxu0 %v1045
    %1111 = vmatprep.subr.mxu0 0.0
    %1112 = vmatpush1.msra.mxu0 %v1046
    %1113 = vmatprep.subr.mxu0 0.0
    %1114 = vmatpush1.msra.mxu0 %v1047
    %1115 = vmatprep.subr.mxu0 0.0
    %1116 = vmatpush1.msra.mxu0 %v1048
    %1117 = vmatprep.subr.mxu0 0.0
    %1118 = vmatpush1.msra.mxu0 %v1049
    %1119 = vmatprep.subr.mxu0 0.0
    %1120 = vmatpush1.msra.mxu0 %v1050
    %1121 = vmatprep.subr.mxu0 0.0
    %1122 = vmatpush1.msra.mxu0 %v1051
    %1123 = vmatprep.subr.mxu0 0.0
    %1124 = vmatpush1.msra.mxu0 %v1052
    %1125 = vmatprep.mubr.f32.mxu0 %v1054
    %1126 = vmatmul.mubr.f32.gmra.mrb[0].mxu0 %v1053
    %v1127 = vpop.f32.mrb[0].mxu0
    %v1128 = vadd.f32 %v1059, %v1127
    %v1129 = vpop.f32.mrb[0].mxu0
    %1130 = vdwg.mxu0
    %1131 = vst [vmem:[#allocation2] sm:$0xff] %v1128
    // Predicated region
    $region30: #{tpu_custom_call.1} parent=1 // pred_check
      _
    $region31: #{tpu_custom_call.1} parent=1 // pred_check_branch
      %1133 = sbr.rel (0) target = $region33
    $region32: #{tpu_custom_call.1} parent=1 // pred_region
      %s1135 = ssub.s32 128, 128
      %1136 = vsyncadd [#allocation3], %s1135
      %s1138 = sshll.u32 [#allocation2], 4
      %s1139 = int_to_ptr.vmem [resolvable:$true] %s1138
      %1141 = dma.vmem_to_hbm [thread:$0]  %s1139, 128, %s7, [#allocation3]
    $region33: #{tpu_custom_call.1} parent=1 // pred_fallthru
      _
    // Predicated region
    $region34: #{tpu_custom_call.1} parent=1 // pred_check
      _
    $region35: #{tpu_custom_call.1} parent=1 // pred_check_branch
      %1143 = sbr.rel (0) target = $region37
    $region36: #{tpu_custom_call.1} parent=1 // pred_region
      %1144 = dma.done [#allocation3], 128
    $region37: #{tpu_custom_call.1} parent=1 // pred_fallthru
      _
    %1145 = vsyncpa [#allocation3], 1

</llo_original>
